<compile_context>
chip_gen: v6e
topology: v6e:2x2x1
jax: 0.10.0
libtpu: 0.0.40
codegen_flags: <defaults>
</compile_context>

<pallas_src>
import math
import functools

import jax
import jax.numpy as jnp
from jax import lax
from jax.experimental import pallas as pl
from jax.experimental.pallas import tpu as pltpu


def _round_up(v, m):
    return (v + m - 1) // m * m


def _vmem_limit_bytes():
    """Scoped-VMEM limit: ~7/8 of physical, capped at 112 MiB."""
    cap = 128 * 1024 * 1024
    try:
        info = pltpu.get_tpu_info()
        cap = int(getattr(info, "vmem_capacity_bytes", cap))
    except Exception:
        pass
    return int(min(cap * 7 // 8, 112 * 1024 * 1024))


def _prep_gate_matrix(w, rows, rows_p, H, Hp, dtype):
    """(rows, 4H) in gate order (i, f, g, o) -> (rows_p, 4Hp) in order (i, f, o, g).

    Zero padded on both axes; padded gate columns get zero weights/bias so that
    sigmoid(0)=0.5 / tanh(0)=0 keep padded h/c columns exactly 0 for all t.
    """
    blocks = (w[:, 0 * H:1 * H],   # i
              w[:, 1 * H:2 * H],   # f
              w[:, 3 * H:4 * H],   # o
              w[:, 2 * H:3 * H])   # g
    out = jnp.zeros((rows_p, 4 * Hp), dtype)
    for k, blk in enumerate(blocks):
        out = out.at[:rows, k * Hp:k * Hp + H].set(blk.astype(dtype))
    return out


# -----------------------------------------------------------------------------
# Phase 1: hoisted input projection  gates_x = x2d @ W_ih + bias  (bf16 out)
# -----------------------------------------------------------------------------
def _xproj_kernel(x_ref, wx_ref, b_ref, gx_ref):
    acc = jnp.dot(x_ref[...], wx_ref[...], preferred_element_type=jnp.float32)
    gx_ref[...] = (acc + b_ref[...]).astype(gx_ref.dtype)   # (1, G) bias broadcasts


def _input_projection(x2d, wx, bias):
    R, Ip = x2d.shape
    G = wx.shape[1]
    # Output tile per buffer is tm*G*2 bytes (bf16): keep it under ~8 MiB so the
    # resident W_ih + double-buffered x/gx tiles fit the scoped VMEM budget.
    row_budget = max(8, (8 * 1024 * 1024) // (2 * G))
    tm = 8
    for cand in (512, 256, 128, 64, 32, 16, 8):
        if cand <= row_budget and R % cand == 0:
            tm = cand
            break

    resident = functools.partial(pl.BlockSpec, pipeline_mode=pl.Buffered(1))
    return pl.pallas_call(
        _xproj_kernel,
        out_shape=jax.ShapeDtypeStruct((R, G), jnp.bfloat16),
        grid_spec=pltpu.PrefetchScalarGridSpec(
            num_scalar_prefetch=0,
            grid=(R // tm,),
            in_specs=[
                pl.BlockSpec((tm, Ip), lambda r: (r, 0)),   # x rows (pipelined)
                resident((Ip, G), lambda r: (0, 0)),        # W_ih (resident, 1 buffer)
                resident((1, G), lambda r: (0, 0)),         # bias (resident, 1 buffer)
            ],
            out_specs=pl.BlockSpec((tm, G), lambda r: (r, 0)),
        ),
        compiler_params=pltpu.CompilerParams(
            dimension_semantics=("parallel",),
            vmem_limit_bytes=_vmem_limit_bytes(),
        ),
    )(x2d, wx, bias)


# -----------------------------------------------------------------------------
# Phase 2: sequential recurrence, tb timesteps per grid step
# -----------------------------------------------------------------------------
def _lstm_recur_kernel(gx_ref, hx_ref, cx_ref, wh_ref,
                       y_ref, hy_ref, cy_ref,
                       h_sc, c_sc, *, hp, tb, t_real, needs_mask, unroll):
    t = pl.program_id(1)   # time-chunk index (axis 0 is the parallel batch block)

    # Initialize recurrent state from hx / cx on the first time chunk of each
    # batch block (time is the innermost grid axis).
    @pl.when(t == 0)
    def _():
        h_sc[...] = hx_ref[0].astype(h_sc.dtype)   # bf16 h state
        c_sc[...] = cx_ref[0]                      # f32 cell state

    def lstm_step(s):
        # gates = gates_x[t] + h_{t-1} @ W_hh   (bf16 matmuls, f32 accumulate)
        gates = gx_ref[s].astype(jnp.float32) + jnp.dot(
            h_sc[...], wh_ref[...], preferred_element_type=jnp.float32)
        # gate order (i, f, o, g): one wide sigmoid slab + one tanh slab.
        sig = jax.nn.sigmoid(gates[:, : 3 * hp])
        i_g = sig[:, 0 * hp:1 * hp]
        f_g = sig[:, 1 * hp:2 * hp]
        o_g = sig[:, 2 * hp:3 * hp]
        g_g = jnp.tanh(gates[:, 3 * hp:])
        c_new = f_g * c_sc[...] + i_g * g_g          # f32 cell state
        h_new = (o_g * jnp.tanh(c_new)).astype(h_sc.dtype)
        c_sc[...] = c_new
        h_sc[...] = h_new
        y_ref[s] = h_new.astype(y_ref.dtype)

    def step(s, carry):
        if needs_mask:
            @pl.when(t * tb + s < t_real)            # skip padded tail timesteps
            def _():
                lstm_step(s)
        else:
            lstm_step(s)
        return carry

    lax.fori_loop(0, tb, step, 0, unroll=unroll)

    # Written every chunk (cheap, stays resident in VMEM) so the final HBM
    # writeback always holds the last real-timestep state.
    hy_ref[0] = h_sc[...].astype(hy_ref.dtype)
    cy_ref[0] = c_sc[...].astype(cy_ref.dtype)


def lstm_forward_pallas(x, hx, cx, w_ih, w_hh, b_ih, b_hh):
    """Pallas equivalent of IRNNBase(mode='LSTM', L=1, D=1).forward.

    x : (T, N, I);  hx, cx : (1, N, H)
    w_ih : (1, I, 4H), w_hh : (1, H, 4H), b_ih/b_hh : (4H,)
    returns y:(T, N, H), (hy:(1, N, H), cy:(1, N, H))
    """
    T, N, I = x.shape
    H = w_hh.shape[1]

    if T == 0:   # degenerate sequence: state passes through unchanged.
        return (jnp.zeros((0, N, H), x.dtype),
                (hx.astype(x.dtype), cx.astype(x.dtype)))

    Np = _round_up(N, 8)
    Hp = _round_up(H, 128)
    Ip = _round_up(I, 128)
    G = 4 * Hp

    tb = 8                            # timesteps per grid step
    Tp = _round_up(T, tb)             # padded sequence length (masked tail)

    # Batch split across TensorCores (v7x megacore) only when each half keeps
    # >= 128 rows so the per-step matmul stays LHS-streaming bound.
    Nb = Np // 2 if (Np >= 256 and (Np // 2) % 8 == 0) else Np
    nb = Np // Nb

    # ---- weight / bias preparation (permuted to (i,f,o,g), zero padded) ----
    wx_p = _prep_gate_matrix(w_ih[0], I, Ip, H, Hp, jnp.bfloat16)      # (Ip, G)
    wh_p = _prep_gate_matrix(w_hh[0], H, Hp, H, Hp, jnp.bfloat16)      # (Hp, G)
    bias = _prep_gate_matrix((b_ih + b_hh).reshape(1, 4 * H),
                             1, 1, H, Hp, jnp.float32)                 # (1, G)

    # ---- padded inputs (bf16 activations for the MXU, f32 state) ----
    x_p = jnp.zeros((Tp, Np, Ip), jnp.bfloat16).at[:T, :N, :I].set(
        x.astype(jnp.bfloat16))
    hx_p = jnp.zeros((1, Np, Hp), jnp.float32).at[:, :N, :H].set(
        hx.astype(jnp.float32))
    cx_p = jnp.zeros((1, Np, Hp), jnp.float32).at[:, :N, :H].set(
        cx.astype(jnp.float32))

    # ---- phase 1: one big matmul for the whole input projection ----
    gates_x = _input_projection(x_p.reshape(Tp * Np, Ip), wx_p, bias)
    gates_x = gates_x.reshape(Tp, Np, G)

    # ---- phase 2: recurrence ----
    needs_mask = (Tp != T)
    unroll = tb if Hp <= 1024 else 4   # cap unroll at large Hp (vreg pressure)
    kernel = functools.partial(_lstm_recur_kernel, hp=Hp, tb=tb, t_real=T,
                               needs_mask=needs_mask, unroll=unroll)

    resident = functools.partial(pl.BlockSpec, pipeline_mode=pl.Buffered(1))

    y_p, hy_p, cy_p = pl.pallas_call(
        kernel,
        out_shape=(
            jax.ShapeDtypeStruct((Tp, Np, Hp), x.dtype),
            jax.ShapeDtypeStruct((1, Np, Hp), x.dtype),
            jax.ShapeDtypeStruct((1, Np, Hp), x.dtype),
        ),
        grid_spec=pltpu.PrefetchScalarGridSpec(
            num_scalar_prefetch=0,
            grid=(nb, Tp // tb),
            in_specs=[
                pl.BlockSpec((tb, Nb, G), lambda b, t: (t, b, 0)),   # gates_x chunk
                pl.BlockSpec((1, Nb, Hp), lambda b, t: (0, b, 0)),   # hx block
                pl.BlockSpec((1, Nb, Hp), lambda b, t: (0, b, 0)),   # cx block
                resident((Hp, G), lambda b, t: (0, 0)),              # W_hh (resident, 1 buffer)
            ],
            out_specs=[
                pl.BlockSpec((tb, Nb, Hp), lambda b, t: (t, b, 0)),  # y chunk
                pl.BlockSpec((1, Nb, Hp), lambda b, t: (0, b, 0)),   # hy
                pl.BlockSpec((1, Nb, Hp), lambda b, t: (0, b, 0)),   # cy
            ],
            scratch_shapes=[
                pltpu.VMEM((Nb, Hp), jnp.bfloat16),                  # h state (bf16)
                pltpu.VMEM((Nb, Hp), jnp.float32),                   # c state (f32)
            ],
        ),
        compiler_params=pltpu.CompilerParams(
            dimension_semantics=("parallel", "arbitrary"),           # time is sequential
            vmem_limit_bytes=_vmem_limit_bytes(),
        ),
    )(gates_x, hx_p, cx_p, wh_p)

    y = y_p[:T, :N, :H]
    hy = hy_p[:, :N, :H]
    cy = cy_p[:, :N, :H]
    return y, (hy, cy)


class IRNNBaseLSTM:
    """Thin JAX wrapper mirroring IRNNBase(mode='LSTM', num_layers=1, bidirectional=False)."""

    def __init__(self, input_size, hidden_size, key):
        self.input_size = input_size
        self.hidden_size = hidden_size
        num_directions = 1
        gate_size = 4 * hidden_size
        stdv = 1.0 / math.sqrt(hidden_size)
        k1, k2, k3, k4 = jax.random.split(key, 4)
        # shapes exactly as in IRNNBase.__init__
        self.w_ih = jax.random.uniform(k1, (num_directions, input_size, gate_size),
                                       jnp.float32, -stdv, stdv)
        self.w_hh = jax.random.uniform(k2, (num_directions, hidden_size, gate_size),
                                       jnp.float32, -stdv, stdv)
        self.b_ih = jax.random.uniform(k3, (gate_size,), jnp.float32, -stdv, stdv)
        self.b_hh = jax.random.uniform(k4, (gate_size,), jnp.float32, -stdv, stdv)

    def __call__(self, x, hx=None):
        T, N, _ = x.shape
        if hx is None:
            h0 = jnp.zeros((1, N, self.hidden_size), x.dtype)
            hx = (h0, h0)
        return lstm_forward_pallas(x, hx[0], hx[1],
                                   self.w_ih, self.w_hh, self.b_ih, self.b_hh)


def _reference_lstm(x, hx, cx, w_ih, w_hh, b_ih, b_hh):
    """Pure-JAX f32 reference for correctness checking."""
    H = w_hh.shape[1]
    bias = b_ih + b_hh
    h = hx[0].astype(jnp.float32)
    c = cx[0].astype(jnp.float32)
    ys = []
    for t in range(x.shape[0]):
        gates = x[t] @ w_ih[0] + h @ w_hh[0] + bias
        i = jax.nn.sigmoid(gates[:, 0 * H:1 * H])
        f = jax.nn.sigmoid(gates[:, 1 * H:2 * H])
        g = jnp.tanh(gates[:, 2 * H:3 * H])
        o = jax.nn.sigmoid(gates[:, 3 * H:4 * H])
        c = f * c + i * g
        h = o * jnp.tanh(c)
        ys.append(h)
    return jnp.stack(ys), h[None], c[None]


def _check(T, N, I, H, key):
    k_param, k_x = jax.random.split(key)
    model = IRNNBaseLSTM(I, H, k_param)
    x = jax.random.normal(k_x, (T, N, I), jnp.float32)

    y, (hy, cy) = model(x)          # hx=None -> zero initial state, like the module
    jax.block_until_ready((y, hy, cy))

    y_ref, hy_ref, cy_ref = _reference_lstm(
        x, jnp.zeros((1, N, H)), jnp.zeros((1, N, H)),
        model.w_ih, model.w_hh, model.b_ih, model.b_hh)
    assert y.shape == (T, N, H) and hy.shape == (1, N, H) and cy.shape == (1, N, H)
    assert jnp.allclose(y, y_ref, atol=3e-2, rtol=1e-2)
    assert jnp.allclose(hy, hy_ref, atol=3e-2, rtol=1e-2)
    assert jnp.allclose(cy, cy_ref, atol=3e-2, rtol=1e-2)
    assert jnp.allclose(hy[0], y[-1], atol=1e-6)


if __name__ == "__main__":
    key = jax.random.PRNGKey(0)
    k1, k2 = jax.random.split(key)
    # seq=8, batch=4, input=16, hidden=32 (no time padding)
    _check(T=8, N=4, I=16, H=32, key=k1)
    # odd seq length exercises the padded / pl.when-masked tail path
    _check(T=5, N=3, I=16, H=32, key=k2)
    print("KERNEL_OK")
</pallas_src>

<mosaic_0001>
module attributes {stable_mosaic.version = 11 : i64} {
  func.func @_xproj_kernel(%arg0: i32, %arg1: memref<64x128xbf16, #tpu.memory_space<vmem>>, %arg2: memref<128x512xbf16, #tpu.memory_space<vmem>>, %arg3: memref<1x512xf32, #tpu.memory_space<vmem>>, %arg4: memref<64x512xbf16, #tpu.memory_space<vmem>>) attributes {dimension_semantics = [#tpu.dimension_semantics<parallel>], iteration_bounds = array<i64: 1>, scalar_prefetch = 0 : i64, scratch_operands = 0 : i64, tpu.core_type = #tpu.core_type<tc>, window_params = [{transform_indices = @transform_0, window_bounds = array<i64: 64, 128>}, {pipeline_mode = #tpu.pipeline_mode<synchronous>, transform_indices = @transform_1, window_bounds = array<i64: 128, 512>}, {pipeline_mode = #tpu.pipeline_mode<synchronous>, transform_indices = @transform_2, window_bounds = array<i64: 1, 512>}, {transform_indices = @transform_3, window_bounds = array<i64: 64, 512>}]} {
    %c0 = arith.constant 0 : index
    %c0_0 = arith.constant 0 : index
    %0 = vector.load %arg1[%c0, %c0_0] : memref<64x128xbf16, #tpu.memory_space<vmem>>, vector<64x128xbf16>
    %c0_1 = arith.constant 0 : index
    %c0_2 = arith.constant 0 : index
    %1 = vector.load %arg2[%c0_1, %c0_2] : memref<128x512xbf16, #tpu.memory_space<vmem>>, vector<128x512xbf16>
    %cst = arith.constant dense<0.000000e+00> : vector<64x512xf32>
    %2 = tpu.matmul %0, %1, %cst {dimension_numbers = #tpu.dot_dimension_numbers<[1], [0], [0], [1], [0, 0, 1, 1], [], []>} : vector<64x128xbf16>, vector<128x512xbf16>, vector<64x512xf32> -> vector<64x512xf32>
    %c0_3 = arith.constant 0 : index
    %c0_4 = arith.constant 0 : index
    %3 = vector.load %arg3[%c0_3, %c0_4] : memref<1x512xf32, #tpu.memory_space<vmem>>, vector<1x512xf32>
    %4 = vector.broadcast %3 : vector<1x512xf32> to vector<64x512xf32>
    %5 = arith.addf %2, %4 : vector<64x512xf32>
    %6 = arith.truncf %5 : vector<64x512xf32> to vector<64x512xbf16>
    %c0_5 = arith.constant 0 : index
    %c0_6 = arith.constant 0 : index
    %7 = vector.load %arg4[%c0_5, %c0_6] : memref<64x512xbf16, #tpu.memory_space<vmem>>, vector<64x512xbf16>
    tpu.vector_store %arg4[%c0_5, %c0_6], %6 {strides = array<i32>} : memref<64x512xbf16, #tpu.memory_space<vmem>>, vector<64x512xbf16>,
    return
  }
  func.func @transform_0(%arg0: i32) -> (i32, i32) {
    %c0_i32 = arith.constant 0 : i32
    %c0_i32_0 = arith.constant 0 : i32
    return %arg0, %c0_i32 : i32, i32
  }
  func.func @transform_1(%arg0: i32) -> (i32, i32) {
    %c0_i32 = arith.constant 0 : i32
    %c0_i32_0 = arith.constant 0 : i32
    %c0_i32_1 = arith.constant 0 : i32
    return %c0_i32, %c0_i32_0 : i32, i32
  }
  func.func @transform_2(%arg0: i32) -> (i32, i32) {
    %c0_i32 = arith.constant 0 : i32
    %c0_i32_0 = arith.constant 0 : i32
    %c0_i32_1 = arith.constant 0 : i32
    return %c0_i32, %c0_i32_0 : i32, i32
  }
  func.func @transform_3(%arg0: i32) -> (i32, i32) {
    %c0_i32 = arith.constant 0 : i32
    %c0_i32_0 = arith.constant 0 : i32
    return %arg0, %c0_i32 : i32, i32
  }
}

</mosaic_0001>

<llo_original>
// kernel: tpu_custom_call.1
$region0: #{tpu_custom_call.1}
  #allocation0 [shape = 'u32[]', space=smem, size = 0x4, offset = 0x4, fixed_abs, tag = 'smem constant byte address 0x4 - core index']
  #allocation1 [shape = 'u32[144,128]{1,0:T(1,128)}', space=vmem, size = 0x12000, scoped, tag = 'internal scratch']
  %s0 = inlined_call_operand.hbm [shape: bf16[64,128], index: 0, kind: input, shape index: {}]
  %s1 = inlined_call_operand.hbm [shape: bf16[128,512], index: 1, kind: input, shape index: {}]
  %s2 = inlined_call_operand.hbm [shape: f32[1,512], index: 2, kind: input, shape index: {}]
  %s3 = inlined_call_operand.hbm [shape: bf16[64,512], index: 3, kind: output, shape index: {}]
  %s4 = sld [smem:[#allocation0]]
  $region34: #{tpu_custom_call.1} parent=0
    _
  %s6 = ssub.s32 1, %s4
  %s7 = scalar_select 0, %s6, %s4
  $region1: #{tpu_custom_call.1} parent=0
    #allocation2 [shape = 'u8[16384]{0}', space=vmem, size = 0x4000, scoped, tag = 'input window, operand 0, single buffered']
    #allocation3 [shape = 's32[1]{0}', space=sflag, size = 0x4, scoped, tag = 'scoped memory for tpu_custom_call.1']
    #allocation4 [shape = 's32[1]{0}', space=sflag, size = 0x4, scoped, tag = 'scoped memory for tpu_custom_call.1']
    #allocation5 [shape = 'u8[131072]{0}', space=vmem, size = 0x20000, scoped, tag = 'input window, operand 1, single buffered']
    #allocation6 [shape = 's32[1]{0}', space=sflag, size = 0x4, scoped, tag = 'scoped memory for tpu_custom_call.1']
    #allocation7 [shape = 'u8[2048]{0}', space=vmem, size = 0x800, scoped, tag = 'input window, operand 2, single buffered']
    #allocation8 [shape = 'u8[65536]{0}', space=vmem, size = 0x10000, scoped, tag = 'output window, operand 0, single buffered']
    %8 = vsyncpa [#allocation3], 0
    %9 = vsyncpa [#allocation6], 0
    %10 = vsyncpa [#allocation4], 0
    // Predicated region
    $region2: #{tpu_custom_call.1} parent=1 // pred_check
      _
    $region3: #{tpu_custom_call.1} parent=1 // pred_check_branch
      %12 = sbr.rel (0) target = $region5
    $region4: #{tpu_custom_call.1} parent=1 // pred_region
      %s14 = ssub.s32 512, 512
      %15 = vsyncadd [#allocation3], %s14
      %s16 = sshll.u32 [#allocation2], 4
      %s17 = int_to_ptr.vmem [resolvable:$true] %s16
      %22 = dma.hbm_to_vmem [thread:$0]  %s0, 512, %s17, [#allocation3], 64, 64, 4
    $region5: #{tpu_custom_call.1} parent=1 // pred_fallthru
      _
    // Predicated region
    $region6: #{tpu_custom_call.1} parent=1 // pred_check
      _
    $region7: #{tpu_custom_call.1} parent=1 // pred_check_branch
      %24 = sbr.rel (0) target = $region9
    $region8: #{tpu_custom_call.1} parent=1 // pred_region
      %s26 = ssub.s32 4096, 4096
      %27 = vsyncadd [#allocation6], %s26
      %s28 = sshll.u32 [#allocation5], 4
      %s29 = int_to_ptr.vmem [resolvable:$true] %s28
      %34 = dma.hbm_to_vmem [thread:$0]  %s1, 4096, %s29, [#allocation6], 256, 256, 16
    $region9: #{tpu_custom_call.1} parent=1 // pred_fallthru
      _
    // Predicated region
    $region10: #{tpu_custom_call.1} parent=1 // pred_check
      _
    $region11: #{tpu_custom_call.1} parent=1 // pred_check_branch
      %36 = sbr.rel (0) target = $region13
    $region12: #{tpu_custom_call.1} parent=1 // pred_region
      %s38 = ssub.s32 64, 64
      %39 = vsyncadd [#allocation6], %s38
      %s41 = sshll.u32 [#allocation7], 4
      %s42 = int_to_ptr.vmem [resolvable:$true] %s41
      %44 = dma.hbm_to_vmem [thread:$0]  %s2, 64, %s42, [#allocation6]
    $region13: #{tpu_custom_call.1} parent=1 // pred_fallthru
      _
    // Predicated region
    $region14: #{tpu_custom_call.1} parent=1 // pred_check
      _
    $region15: #{tpu_custom_call.1} parent=1 // pred_check_branch
      %46 = sbr.rel (0) target = $region17
    $region16: #{tpu_custom_call.1} parent=1 // pred_region
      %47 = dma.done [#allocation3], 512
    $region17: #{tpu_custom_call.1} parent=1 // pred_fallthru
      _
    // Predicated region
    $region18: #{tpu_custom_call.1} parent=1 // pred_check
      _
    $region19: #{tpu_custom_call.1} parent=1 // pred_check_branch
      %49 = sbr.rel (0) target = $region21
    $region20: #{tpu_custom_call.1} parent=1 // pred_region
      %50 = dma.done [#allocation6], 4096
    $region21: #{tpu_custom_call.1} parent=1 // pred_fallthru
      _
    // Predicated region
    $region22: #{tpu_custom_call.1} parent=1 // pred_check
      _
    $region23: #{tpu_custom_call.1} parent=1 // pred_check_branch
      %52 = sbr.rel (0) target = $region25
    $region24: #{tpu_custom_call.1} parent=1 // pred_region
      %53 = dma.done [#allocation6], 64
    $region25: #{tpu_custom_call.1} parent=1 // pred_fallthru
      _
    %v55 = vld [vmem:[#allocation2] sm:$0xf]
    %v56 = vld [vmem:[#allocation2 + $0x4] sm:$0xf]
    %v57 = vld [vmem:[#allocation2 + $0x8] sm:$0xf]
    %v58 = vld [vmem:[#allocation2 + $0xc] sm:$0xf]
    %v59 = vld [vmem:[#allocation2 + $0x10] sm:$0xf]
    %v60 = vld [vmem:[#allocation2 + $0x14] sm:$0xf]
    %v61 = vld [vmem:[#allocation2 + $0x18] sm:$0xf]
    %v62 = vld [vmem:[#allocation2 + $0x1c] sm:$0xf]
    %v63 = vld [vmem:[#allocation5] sm:$0xff]
    %v64 = vld [vmem:[#allocation5 + $0x8] sm:$0xff]
    %v65 = vld [vmem:[#allocation5 + $0x10] sm:$0xff]
    %v66 = vld [vmem:[#allocation5 + $0x18] sm:$0xff]
    %v67 = vld [vmem:[#allocation5 + $0x20] sm:$0xff]
    %v68 = vld [vmem:[#allocation5 + $0x28] sm:$0xff]
    %v69 = vld [vmem:[#allocation5 + $0x30] sm:$0xff]
    %v70 = vld [vmem:[#allocation5 + $0x38] sm:$0xff]
    %v71 = vld [vmem:[#allocation5 + $0x40] sm:$0xff]
    %v72 = vld [vmem:[#allocation5 + $0x48] sm:$0xff]
    %v73 = vld [vmem:[#allocation5 + $0x50] sm:$0xff]
    %v74 = vld [vmem:[#allocation5 + $0x58] sm:$0xff]
    %v75 = vld [vmem:[#allocation5 + $0x60] sm:$0xff]
    %v76 = vld [vmem:[#allocation5 + $0x68] sm:$0xff]
    %v77 = vld [vmem:[#allocation5 + $0x70] sm:$0xff]
    %v78 = vld [vmem:[#allocation5 + $0x78] sm:$0xff]
    %v79 = vld [vmem:[#allocation5 + $0x80] sm:$0xff]
    %v80 = vld [vmem:[#allocation5 + $0x88] sm:$0xff]
    %v81 = vld [vmem:[#allocation5 + $0x90] sm:$0xff]
    %v82 = vld [vmem:[#allocation5 + $0x98] sm:$0xff]
    %v83 = vld [vmem:[#allocation5 + $0xa0] sm:$0xff]
    %v84 = vld [vmem:[#allocation5 + $0xa8] sm:$0xff]
    %v85 = vld [vmem:[#allocation5 + $0xb0] sm:$0xff]
    %v86 = vld [vmem:[#allocation5 + $0xb8] sm:$0xff]
    %v87 = vld [vmem:[#allocation5 + $0xc0] sm:$0xff]
    %v88 = vld [vmem:[#allocation5 + $0xc8] sm:$0xff]
    %v89 = vld [vmem:[#allocation5 + $0xd0] sm:$0xff]
    %v90 = vld [vmem:[#allocation5 + $0xd8] sm:$0xff]
    %v91 = vld [vmem:[#allocation5 + $0xe0] sm:$0xff]
    %v92 = vld [vmem:[#allocation5 + $0xe8] sm:$0xff]
    %v93 = vld [vmem:[#allocation5 + $0xf0] sm:$0xff]
    %v94 = vld [vmem:[#allocation5 + $0xf8] sm:$0xff]
    %v95 = vld [vmem:[#allocation7] sm:$0xf]
    %v97 = vlaneseq
    %v98 = vshrl.u32 %v97, 7
    %v99 = vsub.s32 0, %v98
    %v100 = vrot.slane %v95, %v99
    %v101 = vlaneseq
    %v102 = vshrl.u32 %v101, 7
    %v103 = vsub.s32 1, %v102
    %v104 = vrot.slane %v95, %v103
    %v105 = vlaneseq
    %v106 = vshrl.u32 %v105, 7
    %v107 = vsub.s32 2, %v106
    %v108 = vrot.slane %v95, %v107
    %v109 = vlaneseq
    %v110 = vshrl.u32 %v109, 7
    %v111 = vsub.s32 3, %v110
    %v112 = vrot.slane %v95, %v111
    %v125 = vunpack.c.l.b16 %v55
    %v126 = vunpack.c.l.b16 %v56
    %v127 = vunpack.c.l.b16 %v57
    %v128 = vunpack.c.l.b16 %v58
    %v129 = vunpack.c.l.b16 %v59
    %v130 = vunpack.c.l.b16 %v60
    %v131 = vunpack.c.l.b16 %v61
    %v132 = vunpack.c.l.b16 %v62
    %v133 = vpack.c.b16 %v126, %v125
    %v134 = vpack.c.b16 %v128, %v127
    %v135 = vpack.c.b16 %v130, %v129
    %v136 = vpack.c.b16 %v132, %v131
    %v173 = vunpack.c.l.b16 %v63
    %v174 = vunpack.c.h.b16 %v63
    %v175 = vunpack.c.l.b16 %v64
    %v176 = vunpack.c.h.b16 %v64
    %v177 = vunpack.c.l.b16 %v65
    %v178 = vunpack.c.h.b16 %v65
    %v179 = vunpack.c.l.b16 %v66
    %v180 = vunpack.c.h.b16 %v66
    %v181 = vunpack.c.l.b16 %v67
    %v182 = vunpack.c.h.b16 %v67
    %v183 = vunpack.c.l.b16 %v68
    %v184 = vunpack.c.h.b16 %v68
    %v185 = vunpack.c.l.b16 %v69
    %v186 = vunpack.c.h.b16 %v69
    %v187 = vunpack.c.l.b16 %v70
    %v188 = vunpack.c.h.b16 %v70
    %v189 = vunpack.c.l.b16 %v71
    %v190 = vunpack.c.h.b16 %v71
    %v191 = vunpack.c.l.b16 %v72
    %v192 = vunpack.c.h.b16 %v72
    %v193 = vunpack.c.l.b16 %v73
    %v194 = vunpack.c.h.b16 %v73
    %v195 = vunpack.c.l.b16 %v74
    %v196 = vunpack.c.h.b16 %v74
    %v197 = vunpack.c.l.b16 %v75
    %v198 = vunpack.c.h.b16 %v75
    %v199 = vunpack.c.l.b16 %v76
    %v200 = vunpack.c.h.b16 %v76
    %v201 = vunpack.c.l.b16 %v77
    %v202 = vunpack.c.h.b16 %v77
    %v203 = vunpack.c.l.b16 %v78
    %v204 = vunpack.c.h.b16 %v78
    %v205 = vunpack.c.l.b16 %v79
    %v206 = vunpack.c.h.b16 %v79
    %v207 = vunpack.c.l.b16 %v80
    %v208 = vunpack.c.h.b16 %v80
    %v209 = vunpack.c.l.b16 %v81
    %v210 = vunpack.c.h.b16 %v81
    %v211 = vunpack.c.l.b16 %v82
    %v212 = vunpack.c.h.b16 %v82
    %v213 = vunpack.c.l.b16 %v83
    %v214 = vunpack.c.h.b16 %v83
    %v215 = vunpack.c.l.b16 %v84
    %v216 = vunpack.c.h.b16 %v84
    %v217 = vunpack.c.l.b16 %v85
    %v218 = vunpack.c.h.b16 %v85
    %v219 = vunpack.c.l.b16 %v86
    %v220 = vunpack.c.h.b16 %v86
    %v221 = vunpack.c.l.b16 %v87
    %v222 = vunpack.c.h.b16 %v87
    %v223 = vunpack.c.l.b16 %v88
    %v224 = vunpack.c.h.b16 %v88
    %v225 = vunpack.c.l.b16 %v89
    %v226 = vunpack.c.h.b16 %v89
    %v227 = vunpack.c.l.b16 %v90
    %v228 = vunpack.c.h.b16 %v90
    %v229 = vunpack.c.l.b16 %v91
    %v230 = vunpack.c.h.b16 %v91
    %v231 = vunpack.c.l.b16 %v92
    %v232 = vunpack.c.h.b16 %v92
    %v233 = vunpack.c.l.b16 %v93
    %v234 = vunpack.c.h.b16 %v93
    %v235 = vunpack.c.l.b16 %v94
    %v236 = vunpack.c.h.b16 %v94
    %v237 = vpack.c.b16 %v177, %v173
    %v238 = vpack.c.b16 %v178, %v174
    %v239 = vpack.c.b16 %v179, %v175
    %v240 = vpack.c.b16 %v180, %v176
    %v241 = vpack.c.b16 %v185, %v181
    %v242 = vpack.c.b16 %v186, %v182
    %v243 = vpack.c.b16 %v187, %v183
    %v244 = vpack.c.b16 %v188, %v184
    %v245 = vpack.c.b16 %v193, %v189
    %v246 = vpack.c.b16 %v194, %v190
    %v247 = vpack.c.b16 %v195, %v191
    %v248 = vpack.c.b16 %v196, %v192
    %v249 = vpack.c.b16 %v201, %v197
    %v250 = vpack.c.b16 %v202, %v198
    %v251 = vpack.c.b16 %v203, %v199
    %v252 = vpack.c.b16 %v204, %v200
    %v253 = vpack.c.b16 %v209, %v205
    %v254 = vpack.c.b16 %v210, %v206
    %v255 = vpack.c.b16 %v211, %v207
    %v256 = vpack.c.b16 %v212, %v208
    %v257 = vpack.c.b16 %v217, %v213
    %v258 = vpack.c.b16 %v218, %v214
    %v259 = vpack.c.b16 %v219, %v215
    %v260 = vpack.c.b16 %v220, %v216
    %v261 = vpack.c.b16 %v225, %v221
    %v262 = vpack.c.b16 %v226, %v222
    %v263 = vpack.c.b16 %v227, %v223
    %v264 = vpack.c.b16 %v228, %v224
    %v265 = vpack.c.b16 %v233, %v229
    %v266 = vpack.c.b16 %v234, %v230
    %v267 = vpack.c.b16 %v235, %v231
    %v268 = vpack.c.b16 %v236, %v232
    %301 = vmatprep.subr.bf16.mxu0 %v266
    %302 = vmatpush1.bf16.msra.mxu0 %v265
    %303 = vmatprep.subr.bf16.mxu0 %v262
    %304 = vmatpush1.bf16.msra.mxu0 %v261
    %305 = vmatprep.subr.bf16.mxu0 %v258
    %306 = vmatpush1.bf16.msra.mxu0 %v257
    %307 = vmatprep.subr.bf16.mxu0 %v254
    %308 = vmatpush1.bf16.msra.mxu0 %v253
    %309 = vmatprep.subr.bf16.mxu0 %v250
    %310 = vmatpush1.bf16.msra.mxu0 %v249
    %311 = vmatprep.subr.bf16.mxu0 %v246
    %312 = vmatpush1.bf16.msra.mxu0 %v245
    %313 = vmatprep.subr.bf16.mxu0 %v242
    %314 = vmatpush1.bf16.msra.mxu0 %v241
    %315 = vmatprep.subr.bf16.mxu0 %v238
    %316 = vmatpush1.bf16.msra.mxu0 %v237
    %317 = vmatprep.subr.bf16.mxu0 0
    %318 = vmatpush2.bf16.msra.mxu0 0
    %319 = vmatprep.subr.bf16.mxu0 0
    %320 = vmatpush2.bf16.msra.mxu0 0
    %321 = vmatprep.subr.bf16.mxu0 0
    %322 = vmatpush2.bf16.msra.mxu0 0
    %323 = vmatprep.subr.bf16.mxu0 0
    %324 = vmatpush2.bf16.msra.mxu0 0
    %325 = vmatprep.subr.bf16.mxu0 0
    %326 = vmatpush2.bf16.msra.mxu0 0
    %327 = vmatprep.subr.bf16.mxu0 0
    %328 = vmatpush2.bf16.msra.mxu0 0
    %329 = vmatprep.subr.bf16.mxu0 0
    %330 = vmatpush2.bf16.msra.mxu0 0
    %331 = vmatprep.subr.bf16.mxu0 0
    %332 = vmatpush2.bf16.msra.mxu0 0
    %333 = vmatprep.mubr.bf16.mxu0 0
    %334 = vmatmul.mubr.bf16.gmra.mxu0 %v133
    %v335 = vpop.f32.mrf.mxu0
    %v336 = vadd.f32 %v100, %v335
    %v337 = vpop.f32.mrf.mxu0
    %v338 = vadd.f32 %v104, %v337
    %v339 = vpop.f32.mrf.mxu0
    %v340 = vadd.f32 %v100, %v339
    %v341 = vpop.f32.mrf.mxu0
    %v342 = vadd.f32 %v104, %v341
    %343 = vmatprep.mubr.bf16.mxu0 0
    %344 = vmatmul.mubr.bf16.gmra.mxu0 %v134
    %v345 = vpop.f32.mrf.mxu0
    %v346 = vadd.f32 %v100, %v345
    %v347 = vpop.f32.mrf.mxu0
    %v348 = vadd.f32 %v104, %v347
    %v349 = vpop.f32.mrf.mxu0
    %v350 = vadd.f32 %v100, %v349
    %v351 = vpop.f32.mrf.mxu0
    %v352 = vadd.f32 %v104, %v351
    %353 = vmatprep.mubr.bf16.mxu0 0
    %354 = vmatmul.mubr.bf16.gmra.mxu0 %v135
    %v355 = vpop.f32.mrf.mxu0
    %v356 = vadd.f32 %v100, %v355
    %v357 = vpop.f32.mrf.mxu0
    %v358 = vadd.f32 %v104, %v357
    %v359 = vpop.f32.mrf.mxu0
    %v360 = vadd.f32 %v100, %v359
    %v361 = vpop.f32.mrf.mxu0
    %v362 = vadd.f32 %v104, %v361
    %363 = vmatprep.mubr.bf16.mxu0 0
    %364 = vmatmul.mubr.bf16.gmra.mxu0 %v136
    %v365 = vpop.f32.mrf.mxu0
    %v366 = vadd.f32 %v100, %v365
    %v367 = vpop.f32.mrf.mxu0
    %v368 = vadd.f32 %v104, %v367
    %v369 = vpop.f32.mrf.mxu0
    %v370 = vadd.f32 %v100, %v369
    %v371 = vpop.f32.mrf.mxu0
    %v372 = vadd.f32 %v104, %v371
    %373 = vdwg.mxu0
    %374 = vmatprep.subr.bf16.mxu0 %v268
    %375 = vmatpush1.bf16.msra.mxu0 %v267
    %376 = vmatprep.subr.bf16.mxu0 %v264
    %377 = vmatpush1.bf16.msra.mxu0 %v263
    %378 = vmatprep.subr.bf16.mxu0 %v260
    %379 = vmatpush1.bf16.msra.mxu0 %v259
    %380 = vmatprep.subr.bf16.mxu0 %v256
    %381 = vmatpush1.bf16.msra.mxu0 %v255
    %382 = vmatprep.subr.bf16.mxu0 %v252
    %383 = vmatpush1.bf16.msra.mxu0 %v251
    %384 = vmatprep.subr.bf16.mxu0 %v248
    %385 = vmatpush1.bf16.msra.mxu0 %v247
    %386 = vmatprep.subr.bf16.mxu0 %v244
    %387 = vmatpush1.bf16.msra.mxu0 %v243
    %388 = vmatprep.subr.bf16.mxu0 %v240
    %389 = vmatpush1.bf16.msra.mxu0 %v239
    %390 = vmatprep.subr.bf16.mxu0 0
    %391 = vmatpush2.bf16.msra.mxu0 0
    %392 = vmatprep.subr.bf16.mxu0 0
    %393 = vmatpush2.bf16.msra.mxu0 0
    %394 = vmatprep.subr.bf16.mxu0 0
    %395 = vmatpush2.bf16.msra.mxu0 0
    %396 = vmatprep.subr.bf16.mxu0 0
    %397 = vmatpush2.bf16.msra.mxu0 0
    %398 = vmatprep.subr.bf16.mxu0 0
    %399 = vmatpush2.bf16.msra.mxu0 0
    %400 = vmatprep.subr.bf16.mxu0 0
    %401 = vmatpush2.bf16.msra.mxu0 0
    %402 = vmatprep.subr.bf16.mxu0 0
    %403 = vmatpush2.bf16.msra.mxu0 0
    %404 = vmatprep.subr.bf16.mxu0 0
    %405 = vmatpush2.bf16.msra.mxu0 0
    %406 = vmatprep.mubr.bf16.mxu0 0
    %407 = vmatmul.mubr.bf16.gmra.mxu0 %v133
    %v408 = vpop.f32.mrf.mxu0
    %v409 = vadd.f32 %v108, %v408
    %v410 = vpop.f32.mrf.mxu0
    %v411 = vadd.f32 %v112, %v410
    %v412 = vpop.f32.mrf.mxu0
    %v413 = vadd.f32 %v108, %v412
    %v414 = vpop.f32.mrf.mxu0
    %v415 = vadd.f32 %v112, %v414
    %416 = vmatprep.mubr.bf16.mxu0 0
    %417 = vmatmul.mubr.bf16.gmra.mxu0 %v134
    %v418 = vpop.f32.mrf.mxu0
    %v419 = vadd.f32 %v108, %v418
    %v420 = vpop.f32.mrf.mxu0
    %v421 = vadd.f32 %v112, %v420
    %v422 = vpop.f32.mrf.mxu0
    %v423 = vadd.f32 %v108, %v422
    %v424 = vpop.f32.mrf.mxu0
    %v425 = vadd.f32 %v112, %v424
    %426 = vmatprep.mubr.bf16.mxu0 0
    %427 = vmatmul.mubr.bf16.gmra.mxu0 %v135
    %v428 = vpop.f32.mrf.mxu0
    %v429 = vadd.f32 %v108, %v428
    %v430 = vpop.f32.mrf.mxu0
    %v431 = vadd.f32 %v112, %v430
    %v432 = vpop.f32.mrf.mxu0
    %v433 = vadd.f32 %v108, %v432
    %v434 = vpop.f32.mrf.mxu0
    %v435 = vadd.f32 %v112, %v434
    %436 = vmatprep.mubr.bf16.mxu0 0
    %437 = vmatmul.mubr.bf16.gmra.mxu0 %v136
    %v438 = vpop.f32.mrf.mxu0
    %v439 = vadd.f32 %v108, %v438
    %v440 = vpop.f32.mrf.mxu0
    %v441 = vadd.f32 %v112, %v440
    %v442 = vpop.f32.mrf.mxu0
    %v443 = vadd.f32 %v108, %v442
    %v444 = vpop.f32.mrf.mxu0
    %v445 = vadd.f32 %v112, %v444
    %446 = vdwg.mxu0
    %v447 = vpack.c.bf16 %v340, %v336
    %v448 = vpack.c.bf16 %v342, %v338
    %v449 = vpack.c.bf16 %v413, %v409
    %v450 = vpack.c.bf16 %v415, %v411
    %v451 = vpack.c.bf16 %v350, %v346
    %v452 = vpack.c.bf16 %v352, %v348
    %v453 = vpack.c.bf16 %v423, %v419
    %v454 = vpack.c.bf16 %v425, %v421
    %v455 = vpack.c.bf16 %v360, %v356
    %v456 = vpack.c.bf16 %v362, %v358
    %v457 = vpack.c.bf16 %v433, %v429
    %v458 = vpack.c.bf16 %v435, %v431
    %v459 = vpack.c.bf16 %v370, %v366
    %v460 = vpack.c.bf16 %v372, %v368
    %v461 = vpack.c.bf16 %v443, %v439
    %v462 = vpack.c.bf16 %v445, %v441
    %v479 = vunpack.c.l.b16 %v447
    %v480 = vunpack.c.l.b16 %v448
    %v481 = vunpack.c.l.b16 %v449
    %v482 = vunpack.c.l.b16 %v450
    %v483 = vunpack.c.h.b16 %v447
    %v484 = vunpack.c.h.b16 %v448
    %v485 = vunpack.c.h.b16 %v449
    %v486 = vunpack.c.h.b16 %v450
    %v487 = vunpack.c.l.b16 %v451
    %v488 = vunpack.c.l.b16 %v452
    %v489 = vunpack.c.l.b16 %v453
    %v490 = vunpack.c.l.b16 %v454
    %v491 = vunpack.c.h.b16 %v451
    %v492 = vunpack.c.h.b16 %v452
    %v493 = vunpack.c.h.b16 %v453
    %v494 = vunpack.c.h.b16 %v454
    %v495 = vunpack.c.l.b16 %v455
    %v496 = vunpack.c.l.b16 %v456
    %v497 = vunpack.c.l.b16 %v457
    %v498 = vunpack.c.l.b16 %v458
    %v499 = vunpack.c.h.b16 %v455
    %v500 = vunpack.c.h.b16 %v456
    %v501 = vunpack.c.h.b16 %v457
    %v502 = vunpack.c.h.b16 %v458
    %v503 = vunpack.c.l.b16 %v459
    %v504 = vunpack.c.l.b16 %v460
    %v505 = vunpack.c.l.b16 %v461
    %v506 = vunpack.c.l.b16 %v462
    %v507 = vunpack.c.h.b16 %v459
    %v508 = vunpack.c.h.b16 %v460
    %v509 = vunpack.c.h.b16 %v461
    %v510 = vunpack.c.h.b16 %v462
    %v511 = vpack.c.b16 %v480, %v479
    %v512 = vpack.c.b16 %v482, %v481
    %v513 = vpack.c.b16 %v484, %v483
    %v514 = vpack.c.b16 %v486, %v485
    %v515 = vpack.c.b16 %v488, %v487
    %v516 = vpack.c.b16 %v490, %v489
    %v517 = vpack.c.b16 %v492, %v491
    %v518 = vpack.c.b16 %v494, %v493
    %v519 = vpack.c.b16 %v496, %v495
    %v520 = vpack.c.b16 %v498, %v497
    %v521 = vpack.c.b16 %v500, %v499
    %v522 = vpack.c.b16 %v502, %v501
    %v523 = vpack.c.b16 %v504, %v503
    %v524 = vpack.c.b16 %v506, %v505
    %v525 = vpack.c.b16 %v508, %v507
    %v526 = vpack.c.b16 %v510, %v509
    %543 = vst [vmem:[#allocation8] sm:$0xff] %v511
    %544 = vst [vmem:[#allocation8 + $0x8] sm:$0xff] %v512
    %545 = vst [vmem:[#allocation8 + $0x10] sm:$0xff] %v513
    %546 = vst [vmem:[#allocation8 + $0x18] sm:$0xff] %v514
    %547 = vst [vmem:[#allocation8 + $0x20] sm:$0xff] %v515
    %548 = vst [vmem:[#allocation8 + $0x28] sm:$0xff] %v516
    %549 = vst [vmem:[#allocation8 + $0x30] sm:$0xff] %v517
    %550 = vst [vmem:[#allocation8 + $0x38] sm:$0xff] %v518
    %551 = vst [vmem:[#allocation8 + $0x40] sm:$0xff] %v519
    %552 = vst [vmem:[#allocation8 + $0x48] sm:$0xff] %v520
    %553 = vst [vmem:[#allocation8 + $0x50] sm:$0xff] %v521
    %554 = vst [vmem:[#allocation8 + $0x58] sm:$0xff] %v522
    %555 = vst [vmem:[#allocation8 + $0x60] sm:$0xff] %v523
    %556 = vst [vmem:[#allocation8 + $0x68] sm:$0xff] %v524
    %557 = vst [vmem:[#allocation8 + $0x70] sm:$0xff] %v525
    %558 = vst [vmem:[#allocation8 + $0x78] sm:$0xff] %v526
    // Predicated region
    $region26: #{tpu_custom_call.1} parent=1 // pred_check
      _
    $region27: #{tpu_custom_call.1} parent=1 // pred_check_branch
      %560 = sbr.rel (0) target = $region29
    $region28: #{tpu_custom_call.1} parent=1 // pred_region
      %s562 = ssub.s32 2048, 2048
      %563 = vsyncadd [#allocation4], %s562
      %s564 = sshll.u32 [#allocation8], 4
      %s565 = int_to_ptr.vmem [resolvable:$true] %s564
      %570 = dma.vmem_to_hbm [thread:$0]  %s565, 2048, %s3, [#allocation4], 256, 256, 16
    $region29: #{tpu_custom_call.1} parent=1 // pred_fallthru
      _
    // Predicated region
    $region30: #{tpu_custom_call.1} parent=1 // pred_check
      _
    $region31: #{tpu_custom_call.1} parent=1 // pred_check_branch
      %572 = sbr.rel (0) target = $region33
    $region32: #{tpu_custom_call.1} parent=1 // pred_region
      %573 = dma.done [#allocation4], 2048
    $region33: #{tpu_custom_call.1} parent=1 // pred_fallthru
      _
    %574 = vsyncpa [#allocation3], 1
    %575 = vsyncpa [#allocation6], 1
    %576 = vsyncpa [#allocation4], 1

</llo_original>
